<compile_context>
chip_gen: v5e
topology: v5e:2x2
jax: 0.10.0
libtpu: 0.0.40
codegen_flags: <defaults>
</compile_context>

<pallas_src>
import functools

import jax
import jax.numpy as jnp
from jax.experimental import pallas as pl
from jax.experimental.pallas import tpu as pltpu


# ----------------------------------------------------------------------------
# Fused kernel: conv3x3(+bias,+ReLU) -> per-batch token mean -> linear head.
# Single grid step; everything lives in VMEM.
#
#   x_ref     : (B*(H+2), lanes_pad)  bf16  padded pixel rows, batches stacked on rows
#   wdy_ref   : (3, lanes_pad, W*D)   bf16  dx-folded banded conv weights (one per dy)
#   bflat_ref : (1, W*D)              f32   conv bias tiled over W
#   sel_ref   : (B, M_out)            f32   per-batch row-selection (token sum) matrix
#   wcomb_ref : (W*D, n_cls)          f32   (lane-fold * 1/(H*W)) @ head weight
#   bh_ref    : (1, n_cls)            f32   head bias
#   o_ref     : (B, n_cls)            f32   logits
# ----------------------------------------------------------------------------
def _fused_encoder_pool_head_kernel(x_ref, wdy_ref, bflat_ref, sel_ref,
                                    wcomb_ref, bh_ref, o_ref, *, m_out):
    # 3x3 conv as 3 lane-dense GEMMs (dx shifts are baked into the banded weights).
    pre = jnp.dot(x_ref[0:m_out, :], wdy_ref[0],
                  preferred_element_type=jnp.float32)
    pre = pre + jnp.dot(x_ref[1:1 + m_out, :], wdy_ref[1],
                        preferred_element_type=jnp.float32)
    pre = pre + jnp.dot(x_ref[2:2 + m_out, :], wdy_ref[2],
                        preferred_element_type=jnp.float32)

    feat = jnp.maximum(pre + bflat_ref[...], 0.0)          # bias + ReLU, f32

    # Per-batch token sum on the MXU (selection matrix zeroes the batch-boundary rows).
    pooled = jnp.dot(sel_ref[...], feat,
                     preferred_element_type=jnp.float32)    # (B, W*D)

    # Lane-fold over W + 1/(H*W) mean + head, all pre-folded into wcomb.
    logits = jnp.dot(pooled, wcomb_ref[...],
                     preferred_element_type=jnp.float32) + bh_ref[...]
    o_ref[...] = logits.astype(o_ref.dtype)


# ----------------------------------------------------------------------------
# Wrapper: layout plumbing (NCHW -> padded lane-dense row slab) + weight transforms.
# ----------------------------------------------------------------------------
def full_model_forward(x_nchw, params):
    b, c_in, h, w = x_nchw.shape
    d = params["w_conv"].shape[-1]
    n_cls = params["w_head"].shape[-1]

    lanes = (w + 2) * c_in
    lanes_pad = ((lanes + 127) // 128) * 128               # full, unmasked vregs
    wd = w * d
    rows_per_b = h + 2
    m_in = b * rows_per_b
    m_out = m_in - 2

    # NCHW -> NHWC, zero pad (3x3 conv, pad=1), flatten (W+2, C_in) into lanes,
    # stack batches along the sublane (row) axis, zero-pad lanes to 128.
    x_nhwc = jnp.transpose(x_nchw, (0, 2, 3, 1)).astype(jnp.float32)
    xp = jnp.pad(x_nhwc, ((0, 0), (1, 1), (1, 1), (0, 0)))
    x_slab = xp.reshape(m_in, lanes)
    x_slab = jnp.pad(x_slab, ((0, 0), (0, lanes_pad - lanes))).astype(jnp.bfloat16)

    # dx-folded banded conv weights: for tap dy the matrix row (x_out+dx)*C_in + c,
    # column x_out*D + dd holds w_conv[dy, dx, c, dd]; extra K rows are zero.
    w_conv = params["w_conv"].astype(jnp.float32)           # (3, 3, C_in, D)
    x_idx = jnp.arange(w)
    wdy = jnp.zeros((3, lanes_pad, wd), jnp.float32)
    for dx in range(3):
        shift = jnp.zeros((w + 2, w), jnp.float32).at[x_idx + dx, x_idx].set(1.0)
        band = jnp.einsum("uv,kcd->kucvd", shift, w_conv[:, dx]).reshape(3, lanes, wd)
        wdy = wdy.at[:, :lanes, :].add(band)
    wdy = wdy.astype(jnp.bfloat16)

    bflat = jnp.tile(params["b_conv"].reshape(1, d).astype(jnp.float32), (1, w))

    # Per-batch token-sum selection: sel[bb, bb*(H+2)+y] = 1 for y in [0, H);
    # the two rows per batch that straddle the batch boundary stay zero.
    row_ids = jnp.arange(b)[:, None] * rows_per_b + jnp.arange(h)[None, :]
    sel = jnp.zeros((b, m_out), jnp.float32).at[
        jnp.arange(b)[:, None], row_ids].set(1.0)

    # Fold lane-sum-over-W, the 1/(H*W) mean and the head into one matrix.
    wsum = jnp.tile(jnp.eye(d, dtype=jnp.float32), (w, 1))            # (W*D, D)
    w_comb = (wsum / float(h * w)) @ params["w_head"].astype(jnp.float32)
    b_head = params["b_head"].reshape(1, n_cls).astype(jnp.float32)

    kernel = functools.partial(_fused_encoder_pool_head_kernel, m_out=m_out)

    flops = (2 * 3 * m_out * lanes_pad * wd          # banded conv GEMMs (as executed)
             + 2 * b * m_out * wd                    # token-sum GEMM
             + 2 * b * wd * n_cls)                   # head GEMM
    bytes_accessed = (x_slab.size * 2 + wdy.size * 2
                      + 4 * (bflat.size + sel.size + w_comb.size
                             + b_head.size + b * n_cls))

    out = pl.pallas_call(
        kernel,
        out_shape=jax.ShapeDtypeStruct((b, n_cls), jnp.float32),
        grid=(1,),
        in_specs=[
            pl.BlockSpec((m_in, lanes_pad), lambda i: (0, 0)),
            pl.BlockSpec((3, lanes_pad, wd), lambda i: (0, 0, 0)),
            pl.BlockSpec((1, wd), lambda i: (0, 0)),
            pl.BlockSpec((b, m_out), lambda i: (0, 0)),
            pl.BlockSpec((wd, n_cls), lambda i: (0, 0)),
            pl.BlockSpec((1, n_cls), lambda i: (0, 0)),
        ],
        out_specs=pl.BlockSpec((b, n_cls), lambda i: (0, 0)),
        compiler_params=pltpu.CompilerParams(
            dimension_semantics=("arbitrary",),
            vmem_limit_bytes=32 * 1024 * 1024),
        cost_estimate=pl.CostEstimate(flops=flops, transcendentals=0,
                                      bytes_accessed=bytes_accessed),
    )(x_slab, wdy, bflat, sel, w_comb, b_head)

    return out


# ----------------------------------------------------------------------------
# Pure-JAX reference (plain f32 im2col path).
# ----------------------------------------------------------------------------
def _reference_forward(x_nchw, params):
    b, c_in, h, w = x_nchw.shape
    d = params["w_conv"].shape[-1]
    x = jnp.transpose(x_nchw, (0, 2, 3, 1))
    xp = jnp.pad(x, ((0, 0), (1, 1), (1, 1), (0, 0)))
    cols = [xp[:, dy:dy + h, dx:dx + w, :] for dy in range(3) for dx in range(3)]
    patches = jnp.concatenate(cols, axis=-1).reshape(b * h * w, 9 * c_in)
    feats = jnp.maximum(patches @ params["w_conv"].reshape(9 * c_in, d)
                        + params["b_conv"].reshape(1, d), 0.0)
    pooled = feats.reshape(b, h * w, d).mean(axis=1)
    return pooled @ params["w_head"] + params["b_head"].reshape(1, -1)


def init_params(key, c_in=4, d=32, num_classes=8):
    k1, k2, k3, k4 = jax.random.split(key, 4)
    return {
        "w_conv": jax.random.normal(k1, (3, 3, c_in, d), jnp.float32) * 0.1,
        "b_conv": jax.random.normal(k2, (d,), jnp.float32) * 0.01,
        "w_head": jax.random.normal(k3, (d, num_classes), jnp.float32) * 0.1,
        "b_head": jax.random.normal(k4, (num_classes,), jnp.float32) * 0.01,
    }


if __name__ == "__main__":
    key = jax.random.PRNGKey(0)
    k_x, k_p = jax.random.split(key)

    B, C_IN, H, W = 2, 4, 16, 16
    D, NUM_CLASSES = 32, 8

    x = jax.random.normal(k_x, (B, C_IN, H, W), jnp.float32)   # NCHW like PyTorch
    params = init_params(k_p, c_in=C_IN, d=D, num_classes=NUM_CLASSES)

    fwd = jax.jit(full_model_forward)
    logits = fwd(x, params)
    jax.block_until_ready(logits)

    ref = _reference_forward(x, params)
    assert logits.shape == (B, NUM_CLASSES), logits.shape
    assert bool(jnp.all(jnp.isfinite(logits)))
    max_diff = float(jnp.max(jnp.abs(logits - ref)))
    assert bool(jnp.allclose(logits, ref, rtol=2e-2, atol=2e-2)), max_diff
    print("KERNEL_OK")
</pallas_src>

<mosaic_0001>
module attributes {stable_mosaic.version = 11 : i64} {
  func.func @_fused_encoder_pool_head_kernel(%arg0: i32, %arg1: memref<36x128xbf16, #tpu.memory_space<vmem>>, %arg2: memref<3x128x512xbf16, #tpu.memory_space<vmem>>, %arg3: memref<1x512xf32, #tpu.memory_space<vmem>>, %arg4: memref<2x34xf32, #tpu.memory_space<vmem>>, %arg5: memref<512x8xf32, #tpu.memory_space<vmem>>, %arg6: memref<1x8xf32, #tpu.memory_space<vmem>>, %arg7: memref<2x8xf32, #tpu.memory_space<vmem>>) attributes {dimension_semantics = [#tpu.dimension_semantics<arbitrary>], iteration_bounds = array<i64: 1>, scalar_prefetch = 0 : i64, scratch_operands = 0 : i64, tpu.core_type = #tpu.core_type<tc>, window_params = [{pipeline_mode = #tpu.pipeline_mode<synchronous>, transform_indices = @transform_0, window_bounds = array<i64: 36, 128>}, {pipeline_mode = #tpu.pipeline_mode<synchronous>, transform_indices = @transform_1, window_bounds = array<i64: 3, 128, 512>}, {pipeline_mode = #tpu.pipeline_mode<synchronous>, transform_indices = @transform_2, window_bounds = array<i64: 1, 512>}, {pipeline_mode = #tpu.pipeline_mode<synchronous>, transform_indices = @transform_3, window_bounds = array<i64: 2, 34>}, {pipeline_mode = #tpu.pipeline_mode<synchronous>, transform_indices = @transform_4, window_bounds = array<i64: 512, 8>}, {pipeline_mode = #tpu.pipeline_mode<synchronous>, transform_indices = @transform_5, window_bounds = array<i64: 1, 8>}, {pipeline_mode = #tpu.pipeline_mode<synchronous>, transform_indices = @transform_6, window_bounds = array<i64: 2, 8>}]} {
    %c0 = arith.constant 0 : index
    %c0_0 = arith.constant 0 : index
    %0 = vector.load %arg1[%c0, %c0_0] : memref<36x128xbf16, #tpu.memory_space<vmem>>, vector<34x128xbf16>
    %c0_1 = arith.constant 0 : index
    %c0_2 = arith.constant 0 : index
    %c0_3 = arith.constant 0 : index
    %1 = vector.load %arg2[%c0_1, %c0_2, %c0_3] : memref<3x128x512xbf16, #tpu.memory_space<vmem>>, vector<1x128x512xbf16>
    %2 = vector.shape_cast %1 : vector<1x128x512xbf16> to vector<128x512xbf16>
    %cst = arith.constant dense<0.000000e+00> : vector<34x512xf32>
    %3 = tpu.matmul %0, %2, %cst {dimension_numbers = #tpu.dot_dimension_numbers<[1], [0], [0], [1], [0, 0, 1, 1], [], []>} : vector<34x128xbf16>, vector<128x512xbf16>, vector<34x512xf32> -> vector<34x512xf32>
    %c1 = arith.constant 1 : index
    %c0_4 = arith.constant 0 : index
    %4 = vector.load %arg1[%c1, %c0_4] : memref<36x128xbf16, #tpu.memory_space<vmem>>, vector<34x128xbf16>
    %c1_5 = arith.constant 1 : index
    %c0_6 = arith.constant 0 : index
    %c0_7 = arith.constant 0 : index
    %5 = vector.load %arg2[%c1_5, %c0_6, %c0_7] : memref<3x128x512xbf16, #tpu.memory_space<vmem>>, vector<1x128x512xbf16>
    %6 = vector.shape_cast %5 : vector<1x128x512xbf16> to vector<128x512xbf16>
    %cst_8 = arith.constant dense<0.000000e+00> : vector<34x512xf32>
    %7 = tpu.matmul %4, %6, %cst_8 {dimension_numbers = #tpu.dot_dimension_numbers<[1], [0], [0], [1], [0, 0, 1, 1], [], []>} : vector<34x128xbf16>, vector<128x512xbf16>, vector<34x512xf32> -> vector<34x512xf32>
    %8 = arith.addf %3, %7 : vector<34x512xf32>
    %c2 = arith.constant 2 : index
    %c0_9 = arith.constant 0 : index
    %9 = vector.load %arg1[%c2, %c0_9] : memref<36x128xbf16, #tpu.memory_space<vmem>>, vector<34x128xbf16>
    %c2_10 = arith.constant 2 : index
    %c0_11 = arith.constant 0 : index
    %c0_12 = arith.constant 0 : index
    %10 = vector.load %arg2[%c2_10, %c0_11, %c0_12] : memref<3x128x512xbf16, #tpu.memory_space<vmem>>, vector<1x128x512xbf16>
    %11 = vector.shape_cast %10 : vector<1x128x512xbf16> to vector<128x512xbf16>
    %cst_13 = arith.constant dense<0.000000e+00> : vector<34x512xf32>
    %12 = tpu.matmul %9, %11, %cst_13 {dimension_numbers = #tpu.dot_dimension_numbers<[1], [0], [0], [1], [0, 0, 1, 1], [], []>} : vector<34x128xbf16>, vector<128x512xbf16>, vector<34x512xf32> -> vector<34x512xf32>
    %13 = arith.addf %8, %12 : vector<34x512xf32>
    %c0_14 = arith.constant 0 : index
    %c0_15 = arith.constant 0 : index
    %14 = vector.load %arg3[%c0_14, %c0_15] : memref<1x512xf32, #tpu.memory_space<vmem>>, vector<1x512xf32>
    %15 = vector.broadcast %14 : vector<1x512xf32> to vector<34x512xf32>
    %16 = arith.addf %13, %15 : vector<34x512xf32>
    %cst_16 = arith.constant 0.000000e+00 : f32
    %17 = vector.broadcast %cst_16 : f32 to vector<34x512xf32>
    %18 = arith.maximumf %16, %17 : vector<34x512xf32>
    %c0_17 = arith.constant 0 : index
    %c0_18 = arith.constant 0 : index
    %19 = vector.load %arg4[%c0_17, %c0_18] : memref<2x34xf32, #tpu.memory_space<vmem>>, vector<2x34xf32>
    %cst_19 = arith.constant dense<0.000000e+00> : vector<2x512xf32>
    %20 = tpu.matmul %19, %18, %cst_19 {dimension_numbers = #tpu.dot_dimension_numbers<[1], [0], [0], [1], [0, 0, 1, 1], [], []>} : vector<2x34xf32>, vector<34x512xf32>, vector<2x512xf32> -> vector<2x512xf32>
    %c0_20 = arith.constant 0 : index
    %c0_21 = arith.constant 0 : index
    %21 = vector.load %arg5[%c0_20, %c0_21] : memref<512x8xf32, #tpu.memory_space<vmem>>, vector<512x8xf32>
    %cst_22 = arith.constant dense<0.000000e+00> : vector<2x8xf32>
    %22 = tpu.matmul %20, %21, %cst_22 {dimension_numbers = #tpu.dot_dimension_numbers<[1], [0], [0], [1], [0, 0, 1, 1], [], []>} : vector<2x512xf32>, vector<512x8xf32>, vector<2x8xf32> -> vector<2x8xf32>
    %c0_23 = arith.constant 0 : index
    %c0_24 = arith.constant 0 : index
    %23 = vector.load %arg6[%c0_23, %c0_24] : memref<1x8xf32, #tpu.memory_space<vmem>>, vector<1x8xf32>
    %24 = vector.broadcast %23 : vector<1x8xf32> to vector<2x8xf32>
    %25 = arith.addf %22, %24 : vector<2x8xf32>
    %c0_25 = arith.constant 0 : index
    %c0_26 = arith.constant 0 : index
    %26 = vector.load %arg7[%c0_25, %c0_26] : memref<2x8xf32, #tpu.memory_space<vmem>>, vector<2x8xf32>
    tpu.vector_store %arg7[%c0_25, %c0_26], %25 {strides = array<i32>} : memref<2x8xf32, #tpu.memory_space<vmem>>, vector<2x8xf32>,
    return
  }
  func.func @transform_0(%arg0: i32) -> (i32, i32) {
    %c0_i32 = arith.constant 0 : i32
    %c0_i32_0 = arith.constant 0 : i32
    %c0_i32_1 = arith.constant 0 : i32
    return %c0_i32, %c0_i32_0 : i32, i32
  }
  func.func @transform_1(%arg0: i32) -> (i32, i32, i32) {
    %c0_i32 = arith.constant 0 : i32
    %c0_i32_0 = arith.constant 0 : i32
    %c0_i32_1 = arith.constant 0 : i32
    %c0_i32_2 = arith.constant 0 : i32
    return %c0_i32, %c0_i32_0, %c0_i32_1 : i32, i32, i32
  }
  func.func @transform_2(%arg0: i32) -> (i32, i32) {
    %c0_i32 = arith.constant 0 : i32
    %c0_i32_0 = arith.constant 0 : i32
    %c0_i32_1 = arith.constant 0 : i32
    return %c0_i32, %c0_i32_0 : i32, i32
  }
  func.func @transform_3(%arg0: i32) -> (i32, i32) {
    %c0_i32 = arith.constant 0 : i32
    %c0_i32_0 = arith.constant 0 : i32
    %c0_i32_1 = arith.constant 0 : i32
    return %c0_i32, %c0_i32_0 : i32, i32
  }
  func.func @transform_4(%arg0: i32) -> (i32, i32) {
    %c0_i32 = arith.constant 0 : i32
    %c0_i32_0 = arith.constant 0 : i32
    %c0_i32_1 = arith.constant 0 : i32
    return %c0_i32, %c0_i32_0 : i32, i32
  }
  func.func @transform_5(%arg0: i32) -> (i32, i32) {
    %c0_i32 = arith.constant 0 : i32
    %c0_i32_0 = arith.constant 0 : i32
    %c0_i32_1 = arith.constant 0 : i32
    return %c0_i32, %c0_i32_0 : i32, i32
  }
  func.func @transform_6(%arg0: i32) -> (i32, i32) {
    %c0_i32 = arith.constant 0 : i32
    %c0_i32_0 = arith.constant 0 : i32
    %c0_i32_1 = arith.constant 0 : i32
    return %c0_i32, %c0_i32_0 : i32, i32
  }
}

</mosaic_0001>

<llo_original>
// kernel: full_model_forward.1
$region0: #{full_model_forward.1}
  #allocation0 [shape = 'u32[]', space=smem, size = 0x4, offset = 0x4, fixed_abs, tag = 'smem constant byte address 0x4 - core index']
  #allocation1 [shape = 'u32[72,128]{1,0:T(1,128)}', space=vmem, size = 0x9000, scoped, tag = 'internal scratch']
  %s0 = inlined_call_operand.vmem [shape: bf16[36,128], index: 0, kind: input, shape index: {}]
  %s1 = inlined_call_operand.vmem [shape: bf16[3,128,512], index: 1, kind: input, shape index: {}]
  %s2 = inlined_call_operand.vmem [shape: f32[1,512], index: 2, kind: input, shape index: {}]
  %s3 = inlined_call_operand.vmem [shape: f32[2,34], index: 3, kind: input, shape index: {}]
  %s4 = inlined_call_operand.vmem [shape: f32[512,8], index: 4, kind: input, shape index: {}]
  %s5 = inlined_call_operand.vmem [shape: f32[1,8], index: 5, kind: input, shape index: {}]
  %s6 = inlined_call_operand.hbm [shape: f32[2,8], index: 6, kind: output, shape index: {}]
  %s7 = sld [smem:[#allocation0]]
  $region34: #{full_model_forward.1} parent=0
    _
  %s9 = ssub.s32 1, %s7
  %s10 = scalar_select 0, %s9, %s7
  $region1: #{full_model_forward.1} parent=0
    #allocation2 [shape = 'u8[1024]{0}', space=vmem, size = 0x400, scoped, tag = 'output window, operand 0, single buffered']
    #allocation3 [shape = 's32[1]{0}', space=sflag, size = 0x4, scoped, tag = 'scoped memory for full_model_forward.1']
    %11 = vsyncpa [#allocation3], 0
    // Predicated region
    $region2: #{full_model_forward.1} parent=1 // pred_check
      _
    $region3: #{full_model_forward.1} parent=1 // pred_check_branch
      %13 = sbr.rel (0) target = $region5
    $region4: #{full_model_forward.1} parent=1 // pred_region
      _
    $region5: #{full_model_forward.1} parent=1 // pred_fallthru
      _
    // Predicated region
    $region6: #{full_model_forward.1} parent=1 // pred_check
      _
    $region7: #{full_model_forward.1} parent=1 // pred_check_branch
      %15 = sbr.rel (0) target = $region9
    $region8: #{full_model_forward.1} parent=1 // pred_region
      _
    $region9: #{full_model_forward.1} parent=1 // pred_fallthru
      _
    // Predicated region
    $region10: #{full_model_forward.1} parent=1 // pred_check
      _
    $region11: #{full_model_forward.1} parent=1 // pred_check_branch
      %17 = sbr.rel (0) target = $region13
    $region12: #{full_model_forward.1} parent=1 // pred_region
      _
    $region13: #{full_model_forward.1} parent=1 // pred_fallthru
      _
    // Predicated region
    $region14: #{full_model_forward.1} parent=1 // pred_check
      _
    $region15: #{full_model_forward.1} parent=1 // pred_check_branch
      %19 = sbr.rel (0) target = $region17
    $region16: #{full_model_forward.1} parent=1 // pred_region
      _
    $region17: #{full_model_forward.1} parent=1 // pred_fallthru
      _
    // Predicated region
    $region18: #{full_model_forward.1} parent=1 // pred_check
      _
    $region19: #{full_model_forward.1} parent=1 // pred_check_branch
      %21 = sbr.rel (0) target = $region21
    $region20: #{full_model_forward.1} parent=1 // pred_region
      _
    $region21: #{full_model_forward.1} parent=1 // pred_fallthru
      _
    // Predicated region
    $region22: #{full_model_forward.1} parent=1 // pred_check
      _
    $region23: #{full_model_forward.1} parent=1 // pred_check_branch
      %23 = sbr.rel (0) target = $region25
    $region24: #{full_model_forward.1} parent=1 // pred_region
      _
    $region25: #{full_model_forward.1} parent=1 // pred_fallthru
      _
    %v24 = vld [vmem:[%s0] sm:$0xf]
    %v25 = vld [vmem:[%s0 + $0x4] sm:$0xf]
    %v26 = vld [vmem:[%s0 + $0x8] sm:$0xf]
    %v27 = vld [vmem:[%s0 + $0xc] sm:$0xf]
    %v28 = vld [vmem:[%s0 + $0x10] sm:$0x1]
    %v29 = vld [vmem:[%s1] sm:$0xff]
    %v30 = vld [vmem:[%s1 + $0x8] sm:$0xff]
    %v31 = vld [vmem:[%s1 + $0x10] sm:$0xff]
    %v32 = vld [vmem:[%s1 + $0x18] sm:$0xff]
    %v33 = vld [vmem:[%s1 + $0x20] sm:$0xff]
    %v34 = vld [vmem:[%s1 + $0x28] sm:$0xff]
    %v35 = vld [vmem:[%s1 + $0x30] sm:$0xff]
    %v36 = vld [vmem:[%s1 + $0x38] sm:$0xff]
    %v37 = vld [vmem:[%s1 + $0x40] sm:$0xff]
    %v38 = vld [vmem:[%s1 + $0x48] sm:$0xff]
    %v39 = vld [vmem:[%s1 + $0x50] sm:$0xff]
    %v40 = vld [vmem:[%s1 + $0x58] sm:$0xff]
    %v41 = vld [vmem:[%s1 + $0x60] sm:$0xff]
    %v42 = vld [vmem:[%s1 + $0x68] sm:$0xff]
    %v43 = vld [vmem:[%s1 + $0x70] sm:$0xff]
    %v44 = vld [vmem:[%s1 + $0x78] sm:$0xff]
    %v45 = vld [vmem:[%s1 + $0x80] sm:$0xff]
    %v46 = vld [vmem:[%s1 + $0x88] sm:$0xff]
    %v47 = vld [vmem:[%s1 + $0x90] sm:$0xff]
    %v48 = vld [vmem:[%s1 + $0x98] sm:$0xff]
    %v49 = vld [vmem:[%s1 + $0xa0] sm:$0xff]
    %v50 = vld [vmem:[%s1 + $0xa8] sm:$0xff]
    %v51 = vld [vmem:[%s1 + $0xb0] sm:$0xff]
    %v52 = vld [vmem:[%s1 + $0xb8] sm:$0xff]
    %v53 = vld [vmem:[%s1 + $0xc0] sm:$0xff]
    %v54 = vld [vmem:[%s1 + $0xc8] sm:$0xff]
    %v55 = vld [vmem:[%s1 + $0xd0] sm:$0xff]
    %v56 = vld [vmem:[%s1 + $0xd8] sm:$0xff]
    %v57 = vld [vmem:[%s1 + $0xe0] sm:$0xff]
    %v58 = vld [vmem:[%s1 + $0xe8] sm:$0xff]
    %v59 = vld [vmem:[%s1 + $0xf0] sm:$0xff]
    %v60 = vld [vmem:[%s1 + $0xf8] sm:$0xff]
    %v61 = vld [vmem:[%s0 + $0x10] sm:$0x3]
    %s62 = scalar_lea.vmem %s1, 256
    %v63 = vld [vmem:[%s62] sm:$0xff]
    %v64 = vld [vmem:[%s62 + $0x8] sm:$0xff]
    %v65 = vld [vmem:[%s62 + $0x10] sm:$0xff]
    %v66 = vld [vmem:[%s62 + $0x18] sm:$0xff]
    %v67 = vld [vmem:[%s62 + $0x20] sm:$0xff]
    %v68 = vld [vmem:[%s62 + $0x28] sm:$0xff]
    %v69 = vld [vmem:[%s62 + $0x30] sm:$0xff]
    %v70 = vld [vmem:[%s62 + $0x38] sm:$0xff]
    %v71 = vld [vmem:[%s62 + $0x40] sm:$0xff]
    %v72 = vld [vmem:[%s62 + $0x48] sm:$0xff]
    %v73 = vld [vmem:[%s62 + $0x50] sm:$0xff]
    %v74 = vld [vmem:[%s62 + $0x58] sm:$0xff]
    %v75 = vld [vmem:[%s62 + $0x60] sm:$0xff]
    %v76 = vld [vmem:[%s62 + $0x68] sm:$0xff]
    %v77 = vld [vmem:[%s62 + $0x70] sm:$0xff]
    %v78 = vld [vmem:[%s62 + $0x78] sm:$0xff]
    %v79 = vld [vmem:[%s62 + $0x80] sm:$0xff]
    %v80 = vld [vmem:[%s62 + $0x88] sm:$0xff]
    %v81 = vld [vmem:[%s62 + $0x90] sm:$0xff]
    %v82 = vld [vmem:[%s62 + $0x98] sm:$0xff]
    %v83 = vld [vmem:[%s62 + $0xa0] sm:$0xff]
    %v84 = vld [vmem:[%s62 + $0xa8] sm:$0xff]
    %v85 = vld [vmem:[%s62 + $0xb0] sm:$0xff]
    %v86 = vld [vmem:[%s62 + $0xb8] sm:$0xff]
    %v87 = vld [vmem:[%s62 + $0xc0] sm:$0xff]
    %v88 = vld [vmem:[%s62 + $0xc8] sm:$0xff]
    %v89 = vld [vmem:[%s62 + $0xd0] sm:$0xff]
    %v90 = vld [vmem:[%s62 + $0xd8] sm:$0xff]
    %v91 = vld [vmem:[%s62 + $0xe0] sm:$0xff]
    %v92 = vld [vmem:[%s62 + $0xe8] sm:$0xff]
    %v93 = vld [vmem:[%s62 + $0xf0] sm:$0xff]
    %v94 = vld [vmem:[%s62 + $0xf8] sm:$0xff]
    %v100 = vunpack.c.l.b16 %v24
    %v101 = vunpack.c.l.b16 %v25
    %v102 = vunpack.c.l.b16 %v26
    %v103 = vunpack.c.l.b16 %v27
    %v104 = vunpack.c.l.b16 %v61
    %v105 = vpack.c.b16 %v101, %v100
    %v106 = vpack.c.b16 %v103, %v102
    %v107 = vpack.c.b16 %v104, %v104
    %vm108 = vsmask.f32 7424
    %v110 = vshrl.u32 %v105, 16
    %v112 = vshll.u32 %v105, 16
    %v114 = vrot.slane %v112, 1
    %v115 = vor.u32 %v110, %v114
    %v117 = vshll.u32 %v106, 16
    %v119 = vrot.slane %v117, 1
    %v120 = vsel %vm108, %v115, %v119
    %v121 = vshrl.u32 %v106, 16
    %v123 = vor.u32 %v121, %v119
    %v125 = vshll.u32 %v107, 16
    %v127 = vrot.slane %v125, 1
    %v128 = vsel %vm108, %v123, %v127
    %v129 = vshrl.u32 %v107, 16
    %v131 = vor.u32 %v129, %v127
    %v167 = vunpack.c.l.b16 %v63
    %v168 = vunpack.c.h.b16 %v63
    %v169 = vunpack.c.l.b16 %v64
    %v170 = vunpack.c.h.b16 %v64
    %v171 = vunpack.c.l.b16 %v65
    %v172 = vunpack.c.h.b16 %v65
    %v173 = vunpack.c.l.b16 %v66
    %v174 = vunpack.c.h.b16 %v66
    %v175 = vunpack.c.l.b16 %v67
    %v176 = vunpack.c.h.b16 %v67
    %v177 = vunpack.c.l.b16 %v68
    %v178 = vunpack.c.h.b16 %v68
    %v179 = vunpack.c.l.b16 %v69
    %v180 = vunpack.c.h.b16 %v69
    %v181 = vunpack.c.l.b16 %v70
    %v182 = vunpack.c.h.b16 %v70
    %v183 = vunpack.c.l.b16 %v71
    %v184 = vunpack.c.h.b16 %v71
    %v185 = vunpack.c.l.b16 %v72
    %v186 = vunpack.c.h.b16 %v72
    %v187 = vunpack.c.l.b16 %v73
    %v188 = vunpack.c.h.b16 %v73
    %v189 = vunpack.c.l.b16 %v74
    %v190 = vunpack.c.h.b16 %v74
    %v191 = vunpack.c.l.b16 %v75
    %v192 = vunpack.c.h.b16 %v75
    %v193 = vunpack.c.l.b16 %v76
    %v194 = vunpack.c.h.b16 %v76
    %v195 = vunpack.c.l.b16 %v77
    %v196 = vunpack.c.h.b16 %v77
    %v197 = vunpack.c.l.b16 %v78
    %v198 = vunpack.c.h.b16 %v78
    %v199 = vunpack.c.l.b16 %v79
    %v200 = vunpack.c.h.b16 %v79
    %v201 = vunpack.c.l.b16 %v80
    %v202 = vunpack.c.h.b16 %v80
    %v203 = vunpack.c.l.b16 %v81
    %v204 = vunpack.c.h.b16 %v81
    %v205 = vunpack.c.l.b16 %v82
    %v206 = vunpack.c.h.b16 %v82
    %v207 = vunpack.c.l.b16 %v83
    %v208 = vunpack.c.h.b16 %v83
    %v209 = vunpack.c.l.b16 %v84
    %v210 = vunpack.c.h.b16 %v84
    %v211 = vunpack.c.l.b16 %v85
    %v212 = vunpack.c.h.b16 %v85
    %v213 = vunpack.c.l.b16 %v86
    %v214 = vunpack.c.h.b16 %v86
    %v215 = vunpack.c.l.b16 %v87
    %v216 = vunpack.c.h.b16 %v87
    %v217 = vunpack.c.l.b16 %v88
    %v218 = vunpack.c.h.b16 %v88
    %v219 = vunpack.c.l.b16 %v89
    %v220 = vunpack.c.h.b16 %v89
    %v221 = vunpack.c.l.b16 %v90
    %v222 = vunpack.c.h.b16 %v90
    %v223 = vunpack.c.l.b16 %v91
    %v224 = vunpack.c.h.b16 %v91
    %v225 = vunpack.c.l.b16 %v92
    %v226 = vunpack.c.h.b16 %v92
    %v227 = vunpack.c.l.b16 %v93
    %v228 = vunpack.c.h.b16 %v93
    %v229 = vunpack.c.l.b16 %v94
    %v230 = vunpack.c.h.b16 %v94
    %v231 = vpack.c.b16 %v171, %v167
    %v232 = vpack.c.b16 %v172, %v168
    %v233 = vpack.c.b16 %v173, %v169
    %v234 = vpack.c.b16 %v174, %v170
    %v235 = vpack.c.b16 %v179, %v175
    %v236 = vpack.c.b16 %v180, %v176
    %v237 = vpack.c.b16 %v181, %v177
    %v238 = vpack.c.b16 %v182, %v178
    %v239 = vpack.c.b16 %v187, %v183
    %v240 = vpack.c.b16 %v188, %v184
    %v241 = vpack.c.b16 %v189, %v185
    %v242 = vpack.c.b16 %v190, %v186
    %v243 = vpack.c.b16 %v195, %v191
    %v244 = vpack.c.b16 %v196, %v192
    %v245 = vpack.c.b16 %v197, %v193
    %v246 = vpack.c.b16 %v198, %v194
    %v247 = vpack.c.b16 %v203, %v199
    %v248 = vpack.c.b16 %v204, %v200
    %v249 = vpack.c.b16 %v205, %v201
    %v250 = vpack.c.b16 %v206, %v202
    %v251 = vpack.c.b16 %v211, %v207
    %v252 = vpack.c.b16 %v212, %v208
    %v253 = vpack.c.b16 %v213, %v209
    %v254 = vpack.c.b16 %v214, %v210
    %v255 = vpack.c.b16 %v219, %v215
    %v256 = vpack.c.b16 %v220, %v216
    %v257 = vpack.c.b16 %v221, %v217
    %v258 = vpack.c.b16 %v222, %v218
    %v259 = vpack.c.b16 %v227, %v223
    %v260 = vpack.c.b16 %v228, %v224
    %v261 = vpack.c.b16 %v229, %v225
    %v262 = vpack.c.b16 %v230, %v226
    %295 = vmatpush.bf16.msra.mxu0 %v259
    %296 = vmatpush.bf16.msra.mxu0 %v255
    %297 = vmatpush.bf16.msra.mxu0 %v251
    %298 = vmatpush.bf16.msra.mxu0 %v247
    %299 = vmatpush.bf16.msra.mxu0 %v243
    %300 = vmatpush.bf16.msra.mxu0 %v239
    %301 = vmatpush.bf16.msra.mxu0 %v235
    %302 = vmatpush.bf16.msra.mxu0 %v231
    %303 = vmatmul.bf16.gmra.mxu0 %v120
    %v304 = vpop.f32.mrf.mxu0
    %v305 = vadd.f32 0.0, %v304
    %v306 = vpop.f32.mrf.mxu0
    %v307 = vadd.f32 0.0, %v306
    %308 = vmatmul.bf16.gmra.mxu0 %v128
    %v309 = vpop.f32.mrf.mxu0
    %v310 = vadd.f32 0.0, %v309
    %v311 = vpop.f32.mrf.mxu0
    %v312 = vadd.f32 0.0, %v311
    %313 = vmatmul.bf16.gmra.mxu0 %v131
    %v314 = vpop.f32.mrf.mxu0
    %v315 = vadd.f32 0.0, %v314
    %v316 = vpop.f32.mrf.mxu0
    %317 = vdwg.mxu0
    %318 = vmatpush.bf16.msra.mxu0 %v260
    %319 = vmatpush.bf16.msra.mxu0 %v256
    %320 = vmatpush.bf16.msra.mxu0 %v252
    %321 = vmatpush.bf16.msra.mxu0 %v248
    %322 = vmatpush.bf16.msra.mxu0 %v244
    %323 = vmatpush.bf16.msra.mxu0 %v240
    %324 = vmatpush.bf16.msra.mxu0 %v236
    %325 = vmatpush.bf16.msra.mxu0 %v232
    %326 = vmatmul.bf16.gmra.mxu0 %v120
    %v327 = vpop.f32.mrf.mxu0
    %v328 = vadd.f32 0.0, %v327
    %v329 = vpop.f32.mrf.mxu0
    %v330 = vadd.f32 0.0, %v329
    %331 = vmatmul.bf16.gmra.mxu0 %v128
    %v332 = vpop.f32.mrf.mxu0
    %v333 = vadd.f32 0.0, %v332
    %v334 = vpop.f32.mrf.mxu0
    %v335 = vadd.f32 0.0, %v334
    %336 = vmatmul.bf16.gmra.mxu0 %v131
    %v337 = vpop.f32.mrf.mxu0
    %v338 = vadd.f32 0.0, %v337
    %v339 = vpop.f32.mrf.mxu0
    %340 = vdwg.mxu0
    %341 = vmatpush.bf16.msra.mxu0 %v261
    %342 = vmatpush.bf16.msra.mxu0 %v257
    %343 = vmatpush.bf16.msra.mxu0 %v253
    %344 = vmatpush.bf16.msra.mxu0 %v249
    %345 = vmatpush.bf16.msra.mxu0 %v245
    %346 = vmatpush.bf16.msra.mxu0 %v241
    %347 = vmatpush.bf16.msra.mxu0 %v237
    %348 = vmatpush.bf16.msra.mxu0 %v233
    %349 = vmatmul.bf16.gmra.mxu0 %v120
    %v350 = vpop.f32.mrf.mxu0
    %v351 = vadd.f32 0.0, %v350
    %v352 = vpop.f32.mrf.mxu0
    %v353 = vadd.f32 0.0, %v352
    %354 = vmatmul.bf16.gmra.mxu0 %v128
    %v355 = vpop.f32.mrf.mxu0
    %v356 = vadd.f32 0.0, %v355
    %v357 = vpop.f32.mrf.mxu0
    %v358 = vadd.f32 0.0, %v357
    %359 = vmatmul.bf16.gmra.mxu0 %v131
    %v360 = vpop.f32.mrf.mxu0
    %v361 = vadd.f32 0.0, %v360
    %v362 = vpop.f32.mrf.mxu0
    %363 = vdwg.mxu0
    %364 = vmatpush.bf16.msra.mxu0 %v262
    %365 = vmatpush.bf16.msra.mxu0 %v258
    %366 = vmatpush.bf16.msra.mxu0 %v254
    %367 = vmatpush.bf16.msra.mxu0 %v250
    %368 = vmatpush.bf16.msra.mxu0 %v246
    %369 = vmatpush.bf16.msra.mxu0 %v242
    %370 = vmatpush.bf16.msra.mxu0 %v238
    %371 = vmatpush.bf16.msra.mxu0 %v234
    %372 = vmatmul.bf16.gmra.mxu0 %v120
    %v373 = vpop.f32.mrf.mxu0
    %v374 = vadd.f32 0.0, %v373
    %v375 = vpop.f32.mrf.mxu0
    %v376 = vadd.f32 0.0, %v375
    %377 = vmatmul.bf16.gmra.mxu0 %v128
    %v378 = vpop.f32.mrf.mxu0
    %v379 = vadd.f32 0.0, %v378
    %v380 = vpop.f32.mrf.mxu0
    %v381 = vadd.f32 0.0, %v380
    %382 = vmatmul.bf16.gmra.mxu0 %v131
    %v383 = vpop.f32.mrf.mxu0
    %v384 = vadd.f32 0.0, %v383
    %v385 = vpop.f32.mrf.mxu0
    %386 = vdwg.mxu0
    %v388 = vunpack.c.l.b16 %v28
    %v389 = vpack.c.b16 %v388, %v388
    %v425 = vunpack.c.l.b16 %v29
    %v426 = vunpack.c.h.b16 %v29
    %v427 = vunpack.c.l.b16 %v30
    %v428 = vunpack.c.h.b16 %v30
    %v429 = vunpack.c.l.b16 %v31
    %v430 = vunpack.c.h.b16 %v31
    %v431 = vunpack.c.l.b16 %v32
    %v432 = vunpack.c.h.b16 %v32
    %v433 = vunpack.c.l.b16 %v33
    %v434 = vunpack.c.h.b16 %v33
    %v435 = vunpack.c.l.b16 %v34
    %v436 = vunpack.c.h.b16 %v34
    %v437 = vunpack.c.l.b16 %v35
    %v438 = vunpack.c.h.b16 %v35
    %v439 = vunpack.c.l.b16 %v36
    %v440 = vunpack.c.h.b16 %v36
    %v441 = vunpack.c.l.b16 %v37
    %v442 = vunpack.c.h.b16 %v37
    %v443 = vunpack.c.l.b16 %v38
    %v444 = vunpack.c.h.b16 %v38
    %v445 = vunpack.c.l.b16 %v39
    %v446 = vunpack.c.h.b16 %v39
    %v447 = vunpack.c.l.b16 %v40
    %v448 = vunpack.c.h.b16 %v40
    %v449 = vunpack.c.l.b16 %v41
    %v450 = vunpack.c.h.b16 %v41
    %v451 = vunpack.c.l.b16 %v42
    %v452 = vunpack.c.h.b16 %v42
    %v453 = vunpack.c.l.b16 %v43
    %v454 = vunpack.c.h.b16 %v43
    %v455 = vunpack.c.l.b16 %v44
    %v456 = vunpack.c.h.b16 %v44
    %v457 = vunpack.c.l.b16 %v45
    %v458 = vunpack.c.h.b16 %v45
    %v459 = vunpack.c.l.b16 %v46
    %v460 = vunpack.c.h.b16 %v46
    %v461 = vunpack.c.l.b16 %v47
    %v462 = vunpack.c.h.b16 %v47
    %v463 = vunpack.c.l.b16 %v48
    %v464 = vunpack.c.h.b16 %v48
    %v465 = vunpack.c.l.b16 %v49
    %v466 = vunpack.c.h.b16 %v49
    %v467 = vunpack.c.l.b16 %v50
    %v468 = vunpack.c.h.b16 %v50
    %v469 = vunpack.c.l.b16 %v51
    %v470 = vunpack.c.h.b16 %v51
    %v471 = vunpack.c.l.b16 %v52
    %v472 = vunpack.c.h.b16 %v52
    %v473 = vunpack.c.l.b16 %v53
    %v474 = vunpack.c.h.b16 %v53
    %v475 = vunpack.c.l.b16 %v54
    %v476 = vunpack.c.h.b16 %v54
    %v477 = vunpack.c.l.b16 %v55
    %v478 = vunpack.c.h.b16 %v55
    %v479 = vunpack.c.l.b16 %v56
    %v480 = vunpack.c.h.b16 %v56
    %v481 = vunpack.c.l.b16 %v57
    %v482 = vunpack.c.h.b16 %v57
    %v483 = vunpack.c.l.b16 %v58
    %v484 = vunpack.c.h.b16 %v58
    %v485 = vunpack.c.l.b16 %v59
    %v486 = vunpack.c.h.b16 %v59
    %v487 = vunpack.c.l.b16 %v60
    %v488 = vunpack.c.h.b16 %v60
    %v489 = vpack.c.b16 %v429, %v425
    %v490 = vpack.c.b16 %v430, %v426
    %v491 = vpack.c.b16 %v431, %v427
    %v492 = vpack.c.b16 %v432, %v428
    %v493 = vpack.c.b16 %v437, %v433
    %v494 = vpack.c.b16 %v438, %v434
    %v495 = vpack.c.b16 %v439, %v435
    %v496 = vpack.c.b16 %v440, %v436
    %v497 = vpack.c.b16 %v445, %v441
    %v498 = vpack.c.b16 %v446, %v442
    %v499 = vpack.c.b16 %v447, %v443
    %v500 = vpack.c.b16 %v448, %v444
    %v501 = vpack.c.b16 %v453, %v449
    %v502 = vpack.c.b16 %v454, %v450
    %v503 = vpack.c.b16 %v455, %v451
    %v504 = vpack.c.b16 %v456, %v452
    %v505 = vpack.c.b16 %v461, %v457
    %v506 = vpack.c.b16 %v462, %v458
    %v507 = vpack.c.b16 %v463, %v459
    %v508 = vpack.c.b16 %v464, %v460
    %v509 = vpack.c.b16 %v469, %v465
    %v510 = vpack.c.b16 %v470, %v466
    %v511 = vpack.c.b16 %v471, %v467
    %v512 = vpack.c.b16 %v472, %v468
    %v513 = vpack.c.b16 %v477, %v473
    %v514 = vpack.c.b16 %v478, %v474
    %v515 = vpack.c.b16 %v479, %v475
    %v516 = vpack.c.b16 %v480, %v476
    %v517 = vpack.c.b16 %v485, %v481
    %v518 = vpack.c.b16 %v486, %v482
    %v519 = vpack.c.b16 %v487, %v483
    %v520 = vpack.c.b16 %v488, %v484
    %553 = vmatpush.bf16.msra.mxu0 %v517
    %554 = vmatpush.bf16.msra.mxu0 %v513
    %555 = vmatpush.bf16.msra.mxu0 %v509
    %556 = vmatpush.bf16.msra.mxu0 %v505
    %557 = vmatpush.bf16.msra.mxu0 %v501
    %558 = vmatpush.bf16.msra.mxu0 %v497
    %559 = vmatpush.bf16.msra.mxu0 %v493
    %560 = vmatpush.bf16.msra.mxu0 %v489
    %561 = vmatmul.bf16.gmra.mxu0 %v105
    %v562 = vpop.f32.mrf.mxu0
    %v563 = vadd.f32 %v305, %v562
    %v564 = vpop.f32.mrf.mxu0
    %v565 = vadd.f32 %v307, %v564
    %566 = vmatmul.bf16.gmra.mxu0 %v106
    %v567 = vpop.f32.mrf.mxu0
    %v568 = vadd.f32 %v310, %v567
    %v569 = vpop.f32.mrf.mxu0
    %v570 = vadd.f32 %v312, %v569
    %571 = vmatmul.bf16.gmra.mxu0 %v389
    %v572 = vpop.f32.mrf.mxu0
    %v573 = vadd.f32 %v315, %v572
    %v574 = vpop.f32.mrf.mxu0
    %575 = vdwg.mxu0
    %576 = vmatpush.bf16.msra.mxu0 %v518
    %577 = vmatpush.bf16.msra.mxu0 %v514
    %578 = vmatpush.bf16.msra.mxu0 %v510
    %579 = vmatpush.bf16.msra.mxu0 %v506
    %580 = vmatpush.bf16.msra.mxu0 %v502
    %581 = vmatpush.bf16.msra.mxu0 %v498
    %582 = vmatpush.bf16.msra.mxu0 %v494
    %583 = vmatpush.bf16.msra.mxu0 %v490
    %584 = vmatmul.bf16.gmra.mxu0 %v105
    %v585 = vpop.f32.mrf.mxu0
    %v586 = vadd.f32 %v328, %v585
    %v587 = vpop.f32.mrf.mxu0
    %v588 = vadd.f32 %v330, %v587
    %589 = vmatmul.bf16.gmra.mxu0 %v106
    %v590 = vpop.f32.mrf.mxu0
    %v591 = vadd.f32 %v333, %v590
    %v592 = vpop.f32.mrf.mxu0
    %v593 = vadd.f32 %v335, %v592
    %594 = vmatmul.bf16.gmra.mxu0 %v389
    %v595 = vpop.f32.mrf.mxu0
    %v596 = vadd.f32 %v338, %v595
    %v597 = vpop.f32.mrf.mxu0
    %598 = vdwg.mxu0
    %599 = vmatpush.bf16.msra.mxu0 %v519
    %600 = vmatpush.bf16.msra.mxu0 %v515
    %601 = vmatpush.bf16.msra.mxu0 %v511
    %602 = vmatpush.bf16.msra.mxu0 %v507
    %603 = vmatpush.bf16.msra.mxu0 %v503
    %604 = vmatpush.bf16.msra.mxu0 %v499
    %605 = vmatpush.bf16.msra.mxu0 %v495
    %606 = vmatpush.bf16.msra.mxu0 %v491
    %607 = vmatmul.bf16.gmra.mxu0 %v105
    %v608 = vpop.f32.mrf.mxu0
    %v609 = vadd.f32 %v351, %v608
    %v610 = vpop.f32.mrf.mxu0
    %v611 = vadd.f32 %v353, %v610
    %612 = vmatmul.bf16.gmra.mxu0 %v106
    %v613 = vpop.f32.mrf.mxu0
    %v614 = vadd.f32 %v356, %v613
    %v615 = vpop.f32.mrf.mxu0
    %v616 = vadd.f32 %v358, %v615
    %617 = vmatmul.bf16.gmra.mxu0 %v389
    %v618 = vpop.f32.mrf.mxu0
    %v619 = vadd.f32 %v361, %v618
    %v620 = vpop.f32.mrf.mxu0
    %621 = vdwg.mxu0
    %622 = vmatpush.bf16.msra.mxu0 %v520
    %623 = vmatpush.bf16.msra.mxu0 %v516
    %624 = vmatpush.bf16.msra.mxu0 %v512
    %625 = vmatpush.bf16.msra.mxu0 %v508
    %626 = vmatpush.bf16.msra.mxu0 %v504
    %627 = vmatpush.bf16.msra.mxu0 %v500
    %628 = vmatpush.bf16.msra.mxu0 %v496
    %629 = vmatpush.bf16.msra.mxu0 %v492
    %630 = vmatmul.bf16.gmra.mxu0 %v105
    %v631 = vpop.f32.mrf.mxu0
    %v632 = vadd.f32 %v374, %v631
    %v633 = vpop.f32.mrf.mxu0
    %v634 = vadd.f32 %v376, %v633
    %635 = vmatmul.bf16.gmra.mxu0 %v106
    %v636 = vpop.f32.mrf.mxu0
    %v637 = vadd.f32 %v379, %v636
    %v638 = vpop.f32.mrf.mxu0
    %v639 = vadd.f32 %v381, %v638
    %640 = vmatmul.bf16.gmra.mxu0 %v389
    %v641 = vpop.f32.mrf.mxu0
    %v642 = vadd.f32 %v384, %v641
    %v643 = vpop.f32.mrf.mxu0
    %644 = vdwg.mxu0
    %v645 = vld [vmem:[%s0] sm:$0xe]
    %s646 = scalar_lea.vmem %s1, 512
    %v647 = vld [vmem:[%s646] sm:$0xff]
    %v648 = vld [vmem:[%s646 + $0x8] sm:$0xff]
    %v649 = vld [vmem:[%s646 + $0x10] sm:$0xff]
    %v650 = vld [vmem:[%s646 + $0x18] sm:$0xff]
    %v651 = vld [vmem:[%s646 + $0x20] sm:$0xff]
    %v652 = vld [vmem:[%s646 + $0x28] sm:$0xff]
    %v653 = vld [vmem:[%s646 + $0x30] sm:$0xff]
    %v654 = vld [vmem:[%s646 + $0x38] sm:$0xff]
    %v655 = vld [vmem:[%s646 + $0x40] sm:$0xff]
    %v656 = vld [vmem:[%s646 + $0x48] sm:$0xff]
    %v657 = vld [vmem:[%s646 + $0x50] sm:$0xff]
    %v658 = vld [vmem:[%s646 + $0x58] sm:$0xff]
    %v659 = vld [vmem:[%s646 + $0x60] sm:$0xff]
    %v660 = vld [vmem:[%s646 + $0x68] sm:$0xff]
    %v661 = vld [vmem:[%s646 + $0x70] sm:$0xff]
    %v662 = vld [vmem:[%s646 + $0x78] sm:$0xff]
    %v663 = vld [vmem:[%s646 + $0x80] sm:$0xff]
    %v664 = vld [vmem:[%s646 + $0x88] sm:$0xff]
    %v665 = vld [vmem:[%s646 + $0x90] sm:$0xff]
    %v666 = vld [vmem:[%s646 + $0x98] sm:$0xff]
    %v667 = vld [vmem:[%s646 + $0xa0] sm:$0xff]
    %v668 = vld [vmem:[%s646 + $0xa8] sm:$0xff]
    %v669 = vld [vmem:[%s646 + $0xb0] sm:$0xff]
    %v670 = vld [vmem:[%s646 + $0xb8] sm:$0xff]
    %v671 = vld [vmem:[%s646 + $0xc0] sm:$0xff]
    %v672 = vld [vmem:[%s646 + $0xc8] sm:$0xff]
    %v673 = vld [vmem:[%s646 + $0xd0] sm:$0xff]
    %v674 = vld [vmem:[%s646 + $0xd8] sm:$0xff]
    %v675 = vld [vmem:[%s646 + $0xe0] sm:$0xff]
    %v676 = vld [vmem:[%s646 + $0xe8] sm:$0xff]
    %v677 = vld [vmem:[%s646 + $0xf0] sm:$0xff]
    %v678 = vld [vmem:[%s646 + $0xf8] sm:$0xff]
    %v680 = vunpack.c.l.b16 %v645
    %v681 = vpack.c.b16 %v101, %v680
    %vm682 = vcmask 1046528
    %v683 = vrot.slane %v681, 1
    %v684 = vrot.slane %v106, 1
    %v685 = vsel %vm682, %v683, %v684
    %v686 = vrot.slane %v107, 1
    %v687 = vsel %vm682, %v684, %v686
    %v723 = vunpack.c.l.b16 %v647
    %v724 = vunpack.c.h.b16 %v647
    %v725 = vunpack.c.l.b16 %v648
    %v726 = vunpack.c.h.b16 %v648
    %v727 = vunpack.c.l.b16 %v649
    %v728 = vunpack.c.h.b16 %v649
    %v729 = vunpack.c.l.b16 %v650
    %v730 = vunpack.c.h.b16 %v650
    %v731 = vunpack.c.l.b16 %v651
    %v732 = vunpack.c.h.b16 %v651
    %v733 = vunpack.c.l.b16 %v652
    %v734 = vunpack.c.h.b16 %v652
    %v735 = vunpack.c.l.b16 %v653
    %v736 = vunpack.c.h.b16 %v653
    %v737 = vunpack.c.l.b16 %v654
    %v738 = vunpack.c.h.b16 %v654
    %v739 = vunpack.c.l.b16 %v655
    %v740 = vunpack.c.h.b16 %v655
    %v741 = vunpack.c.l.b16 %v656
    %v742 = vunpack.c.h.b16 %v656
    %v743 = vunpack.c.l.b16 %v657
    %v744 = vunpack.c.h.b16 %v657
    %v745 = vunpack.c.l.b16 %v658
    %v746 = vunpack.c.h.b16 %v658
    %v747 = vunpack.c.l.b16 %v659
    %v748 = vunpack.c.h.b16 %v659
    %v749 = vunpack.c.l.b16 %v660
    %v750 = vunpack.c.h.b16 %v660
    %v751 = vunpack.c.l.b16 %v661
    %v752 = vunpack.c.h.b16 %v661
    %v753 = vunpack.c.l.b16 %v662
    %v754 = vunpack.c.h.b16 %v662
    %v755 = vunpack.c.l.b16 %v663
    %v756 = vunpack.c.h.b16 %v663
    %v757 = vunpack.c.l.b16 %v664
    %v758 = vunpack.c.h.b16 %v664
    %v759 = vunpack.c.l.b16 %v665
    %v760 = vunpack.c.h.b16 %v665
    %v761 = vunpack.c.l.b16 %v666
    %v762 = vunpack.c.h.b16 %v666
    %v763 = vunpack.c.l.b16 %v667
    %v764 = vunpack.c.h.b16 %v667
    %v765 = vunpack.c.l.b16 %v668
    %v766 = vunpack.c.h.b16 %v668
    %v767 = vunpack.c.l.b16 %v669
    %v768 = vunpack.c.h.b16 %v669
    %v769 = vunpack.c.l.b16 %v670
    %v770 = vunpack.c.h.b16 %v670
    %v771 = vunpack.c.l.b16 %v671
    %v772 = vunpack.c.h.b16 %v671
    %v773 = vunpack.c.l.b16 %v672
    %v774 = vunpack.c.h.b16 %v672
    %v775 = vunpack.c.l.b16 %v673
    %v776 = vunpack.c.h.b16 %v673
    %v777 = vunpack.c.l.b16 %v674
    %v778 = vunpack.c.h.b16 %v674
    %v779 = vunpack.c.l.b16 %v675
    %v780 = vunpack.c.h.b16 %v675
    %v781 = vunpack.c.l.b16 %v676
    %v782 = vunpack.c.h.b16 %v676
    %v783 = vunpack.c.l.b16 %v677
    %v784 = vunpack.c.h.b16 %v677
    %v785 = vunpack.c.l.b16 %v678
    %v786 = vunpack.c.h.b16 %v678
    %v787 = vpack.c.b16 %v727, %v723
    %v788 = vpack.c.b16 %v728, %v724
    %v789 = vpack.c.b16 %v729, %v725
    %v790 = vpack.c.b16 %v730, %v726
    %v791 = vpack.c.b16 %v735, %v731
    %v792 = vpack.c.b16 %v736, %v732
    %v793 = vpack.c.b16 %v737, %v733
    %v794 = vpack.c.b16 %v738, %v734
    %v795 = vpack.c.b16 %v743, %v739
    %v796 = vpack.c.b16 %v744, %v740
    %v797 = vpack.c.b16 %v745, %v741
    %v798 = vpack.c.b16 %v746, %v742
    %v799 = vpack.c.b16 %v751, %v747
    %v800 = vpack.c.b16 %v752, %v748
    %v801 = vpack.c.b16 %v753, %v749
    %v802 = vpack.c.b16 %v754, %v750
    %v803 = vpack.c.b16 %v759, %v755
    %v804 = vpack.c.b16 %v760, %v756
    %v805 = vpack.c.b16 %v761, %v757
    %v806 = vpack.c.b16 %v762, %v758
    %v807 = vpack.c.b16 %v767, %v763
    %v808 = vpack.c.b16 %v768, %v764
    %v809 = vpack.c.b16 %v769, %v765
    %v810 = vpack.c.b16 %v770, %v766
    %v811 = vpack.c.b16 %v775, %v771
    %v812 = vpack.c.b16 %v776, %v772
    %v813 = vpack.c.b16 %v777, %v773
    %v814 = vpack.c.b16 %v778, %v774
    %v815 = vpack.c.b16 %v783, %v779
    %v816 = vpack.c.b16 %v784, %v780
    %v817 = vpack.c.b16 %v785, %v781
    %v818 = vpack.c.b16 %v786, %v782
    %851 = vmatpush.bf16.msra.mxu0 %v815
    %852 = vmatpush.bf16.msra.mxu0 %v811
    %853 = vmatpush.bf16.msra.mxu0 %v807
    %854 = vmatpush.bf16.msra.mxu0 %v803
    %855 = vmatpush.bf16.msra.mxu0 %v799
    %856 = vmatpush.bf16.msra.mxu0 %v795
    %857 = vmatpush.bf16.msra.mxu0 %v791
    %858 = vmatpush.bf16.msra.mxu0 %v787
    %859 = vmatmul.bf16.gmra.mxu0 %v685
    %v860 = vpop.f32.mrf.mxu0
    %v861 = vadd.f32 0.0, %v860
    %v862 = vpop.f32.mrf.mxu0
    %v863 = vadd.f32 0.0, %v862
    %864 = vmatmul.bf16.gmra.mxu0 %v687
    %v865 = vpop.f32.mrf.mxu0
    %v866 = vadd.f32 0.0, %v865
    %v867 = vpop.f32.mrf.mxu0
    %v868 = vadd.f32 0.0, %v867
    %869 = vmatmul.bf16.gmra.mxu0 %v686
    %v870 = vpop.f32.mrf.mxu0
    %v871 = vadd.f32 0.0, %v870
    %v872 = vpop.f32.mrf.mxu0
    %873 = vdwg.mxu0
    %874 = vmatpush.bf16.msra.mxu0 %v816
    %875 = vmatpush.bf16.msra.mxu0 %v812
    %876 = vmatpush.bf16.msra.mxu0 %v808
    %877 = vmatpush.bf16.msra.mxu0 %v804
    %878 = vmatpush.bf16.msra.mxu0 %v800
    %879 = vmatpush.bf16.msra.mxu0 %v796
    %880 = vmatpush.bf16.msra.mxu0 %v792
    %881 = vmatpush.bf16.msra.mxu0 %v788
    %882 = vmatmul.bf16.gmra.mxu0 %v685
    %v883 = vpop.f32.mrf.mxu0
    %v884 = vadd.f32 0.0, %v883
    %v885 = vpop.f32.mrf.mxu0
    %v886 = vadd.f32 0.0, %v885
    %887 = vmatmul.bf16.gmra.mxu0 %v687
    %v888 = vpop.f32.mrf.mxu0
    %v889 = vadd.f32 0.0, %v888
    %v890 = vpop.f32.mrf.mxu0
    %v891 = vadd.f32 0.0, %v890
    %892 = vmatmul.bf16.gmra.mxu0 %v686
    %v893 = vpop.f32.mrf.mxu0
    %v894 = vadd.f32 0.0, %v893
    %v895 = vpop.f32.mrf.mxu0
    %896 = vdwg.mxu0
    %897 = vmatpush.bf16.msra.mxu0 %v817
    %898 = vmatpush.bf16.msra.mxu0 %v813
    %899 = vmatpush.bf16.msra.mxu0 %v809
    %900 = vmatpush.bf16.msra.mxu0 %v805
    %901 = vmatpush.bf16.msra.mxu0 %v801
    %902 = vmatpush.bf16.msra.mxu0 %v797
    %903 = vmatpush.bf16.msra.mxu0 %v793
    %904 = vmatpush.bf16.msra.mxu0 %v789
    %905 = vmatmul.bf16.gmra.mxu0 %v685
    %v906 = vpop.f32.mrf.mxu0
    %v907 = vadd.f32 0.0, %v906
    %v908 = vpop.f32.mrf.mxu0
    %v909 = vadd.f32 0.0, %v908
    %910 = vmatmul.bf16.gmra.mxu0 %v687
    %v911 = vpop.f32.mrf.mxu0
    %v912 = vadd.f32 0.0, %v911
    %v913 = vpop.f32.mrf.mxu0
    %v914 = vadd.f32 0.0, %v913
    %915 = vmatmul.bf16.gmra.mxu0 %v686
    %v916 = vpop.f32.mrf.mxu0
    %v917 = vadd.f32 0.0, %v916
    %v918 = vpop.f32.mrf.mxu0
    %919 = vdwg.mxu0
    %920 = vmatpush.bf16.msra.mxu0 %v818
    %921 = vmatpush.bf16.msra.mxu0 %v814
    %922 = vmatpush.bf16.msra.mxu0 %v810
    %923 = vmatpush.bf16.msra.mxu0 %v806
    %924 = vmatpush.bf16.msra.mxu0 %v802
    %925 = vmatpush.bf16.msra.mxu0 %v798
    %926 = vmatpush.bf16.msra.mxu0 %v794
    %927 = vmatpush.bf16.msra.mxu0 %v790
    %928 = vmatmul.bf16.gmra.mxu0 %v685
    %v929 = vpop.f32.mrf.mxu0
    %v930 = vadd.f32 0.0, %v929
    %v931 = vpop.f32.mrf.mxu0
    %v932 = vadd.f32 0.0, %v931
    %933 = vmatmul.bf16.gmra.mxu0 %v687
    %v934 = vpop.f32.mrf.mxu0
    %v935 = vadd.f32 0.0, %v934
    %v936 = vpop.f32.mrf.mxu0
    %v937 = vadd.f32 0.0, %v936
    %938 = vmatmul.bf16.gmra.mxu0 %v686
    %v939 = vpop.f32.mrf.mxu0
    %v940 = vadd.f32 0.0, %v939
    %v941 = vpop.f32.mrf.mxu0
    %942 = vdwg.mxu0
    %v943 = vadd.f32 %v563, %v861
    %v944 = vadd.f32 %v586, %v884
    %v945 = vadd.f32 %v609, %v907
    %v946 = vadd.f32 %v632, %v930
    %v947 = vadd.f32 %v565, %v863
    %v948 = vadd.f32 %v588, %v886
    %v949 = vadd.f32 %v611, %v909
    %v950 = vadd.f32 %v634, %v932
    %v951 = vadd.f32 %v568, %v866
    %v952 = vadd.f32 %v591, %v889
    %v953 = vadd.f32 %v614, %v912
    %v954 = vadd.f32 %v637, %v935
    %v955 = vadd.f32 %v570, %v868
    %v956 = vadd.f32 %v593, %v891
    %v957 = vadd.f32 %v616, %v914
    %v958 = vadd.f32 %v639, %v937
    %v959 = vadd.f32 %v573, %v871
    %v960 = vadd.f32 %v596, %v894
    %v961 = vadd.f32 %v619, %v917
    %v962 = vadd.f32 %v642, %v940
    %v963 = vld [vmem:[%s2] sm:$0xf]
    %v965 = vperm.slane %v963, 0
    %v966 = vperm.slane %v963, 1
    %v967 = vperm.slane %v963, 2
    %v968 = vperm.slane %v963, 3
    %v973 = vadd.f32 %v943, %v965
    %v974 = vadd.f32 %v944, %v966
    %v975 = vadd.f32 %v945, %v967
    %v976 = vadd.f32 %v946, %v968
    %v977 = vadd.f32 %v947, %v965
    %v978 = vadd.f32 %v948, %v966
    %v979 = vadd.f32 %v949, %v967
    %v980 = vadd.f32 %v950, %v968
    %v981 = vadd.f32 %v951, %v965
    %v982 = vadd.f32 %v952, %v966
    %v983 = vadd.f32 %v953, %v967
    %v984 = vadd.f32 %v954, %v968
    %v985 = vadd.f32 %v955, %v965
    %v986 = vadd.f32 %v956, %v966
    %v987 = vadd.f32 %v957, %v967
    %v988 = vadd.f32 %v958, %v968
    %v989 = vadd.f32 %v959, %v965
    %v990 = vadd.f32 %v960, %v966
    %v991 = vadd.f32 %v961, %v967
    %v992 = vadd.f32 %v962, %v968
    %v993 = vmax.f32 %v973, 0.0
    %v994 = vmax.f32 %v974, 0.0
    %v995 = vmax.f32 %v975, 0.0
    %v996 = vmax.f32 %v976, 0.0
    %v997 = vmax.f32 %v977, 0.0
    %v998 = vmax.f32 %v978, 0.0
    %v999 = vmax.f32 %v979, 0.0
    %v1000 = vmax.f32 %v980, 0.0
    %v1001 = vmax.f32 %v981, 0.0
    %v1002 = vmax.f32 %v982, 0.0
    %v1003 = vmax.f32 %v983, 0.0
    %v1004 = vmax.f32 %v984, 0.0
    %v1005 = vmax.f32 %v985, 0.0
    %v1006 = vmax.f32 %v986, 0.0
    %v1007 = vmax.f32 %v987, 0.0
    %v1008 = vmax.f32 %v988, 0.0
    %v1009 = vmax.f32 %v989, 0.0
    %v1010 = vmax.f32 %v990, 0.0
    %v1011 = vmax.f32 %v991, 0.0
    %v1012 = vmax.f32 %v992, 0.0
    %v1013 = vld [vmem:[%s3] sm:$0x3]
    %vm1014 = vcmask 277504
    %v1016 = vsel %vm1014, %v1013, 0
    %vm1018 = vcmask 1041408
    %v1020 = vsel %vm1018, %v1009, 0
    %v1023 = vsel %vm1018, %v1010, 0
    %v1026 = vsel %vm1018, %v1011, 0
    %v1029 = vsel %vm1018, %v1012, 0
    %1031 = vmatpush.msra.mxu0 0.0
    %1032 = vmatpush.msra.mxu0 0.0
    %1033 = vmatpush.msra.mxu0 0.0
    %1034 = vmatpush.msra.mxu0 0.0
    %1035 = vmatpush.msra.mxu0 0.0
    %1036 = vmatpush.msra.mxu0 0.0
    %1037 = vmatpush.msra.mxu0 0.0
    %1038 = vmatpush.msra.mxu0 0.0
    %1039 = vmatpush.msra.mxu0 0.0
    %1040 = vmatpush.msra.mxu0 0.0
    %1041 = vmatpush.msra.mxu0 0.0
    %1042 = vmatpush.msra.mxu0 %v1020
    %1043 = vmatpush.msra.mxu0 %v1005
    %1044 = vmatpush.msra.mxu0 %v1001
    %1045 = vmatpush.msra.mxu0 %v997
    %1046 = vmatpush.msra.mxu0 %v993
    %1047 = vmatmul.f32.gmra.mxu0 %v1016
    %v1048 = vpop.f32.mrf.mxu0
    %v1049 = vadd.f32 0.0, %v1048
    %1050 = vdwg.mxu0
    %1051 = vmatpush.msra.mxu0 0.0
    %1052 = vmatpush.msra.mxu0 0.0
    %1053 = vmatpush.msra.mxu0 0.0
    %1054 = vmatpush.msra.mxu0 0.0
    %1055 = vmatpush.msra.mxu0 0.0
    %1056 = vmatpush.msra.mxu0 0.0
    %1057 = vmatpush.msra.mxu0 0.0
    %1058 = vmatpush.msra.mxu0 0.0
    %1059 = vmatpush.msra.mxu0 0.0
    %1060 = vmatpush.msra.mxu0 0.0
    %1061 = vmatpush.msra.mxu0 0.0
    %1062 = vmatpush.msra.mxu0 %v1023
    %1063 = vmatpush.msra.mxu0 %v1006
    %1064 = vmatpush.msra.mxu0 %v1002
    %1065 = vmatpush.msra.mxu0 %v998
    %1066 = vmatpush.msra.mxu0 %v994
    %1067 = vmatmul.f32.gmra.mxu0 %v1016
    %v1068 = vpop.f32.mrf.mxu0
    %v1069 = vadd.f32 0.0, %v1068
    %1070 = vdwg.mxu0
    %1071 = vmatpush.msra.mxu0 0.0
    %1072 = vmatpush.msra.mxu0 0.0
    %1073 = vmatpush.msra.mxu0 0.0
    %1074 = vmatpush.msra.mxu0 0.0
    %1075 = vmatpush.msra.mxu0 0.0
    %1076 = vmatpush.msra.mxu0 0.0
    %1077 = vmatpush.msra.mxu0 0.0
    %1078 = vmatpush.msra.mxu0 0.0
    %1079 = vmatpush.msra.mxu0 0.0
    %1080 = vmatpush.msra.mxu0 0.0
    %1081 = vmatpush.msra.mxu0 0.0
    %1082 = vmatpush.msra.mxu0 %v1026
    %1083 = vmatpush.msra.mxu0 %v1007
    %1084 = vmatpush.msra.mxu0 %v1003
    %1085 = vmatpush.msra.mxu0 %v999
    %1086 = vmatpush.msra.mxu0 %v995
    %1087 = vmatmul.f32.gmra.mxu0 %v1016
    %v1088 = vpop.f32.mrf.mxu0
    %v1089 = vadd.f32 0.0, %v1088
    %1090 = vdwg.mxu0
    %1091 = vmatpush.msra.mxu0 0.0
    %1092 = vmatpush.msra.mxu0 0.0
    %1093 = vmatpush.msra.mxu0 0.0
    %1094 = vmatpush.msra.mxu0 0.0
    %1095 = vmatpush.msra.mxu0 0.0
    %1096 = vmatpush.msra.mxu0 0.0
    %1097 = vmatpush.msra.mxu0 0.0
    %1098 = vmatpush.msra.mxu0 0.0
    %1099 = vmatpush.msra.mxu0 0.0
    %1100 = vmatpush.msra.mxu0 0.0
    %1101 = vmatpush.msra.mxu0 0.0
    %1102 = vmatpush.msra.mxu0 %v1029
    %1103 = vmatpush.msra.mxu0 %v1008
    %1104 = vmatpush.msra.mxu0 %v1004
    %1105 = vmatpush.msra.mxu0 %v1000
    %1106 = vmatpush.msra.mxu0 %v996
    %1107 = vmatmul.f32.gmra.mxu0 %v1016
    %v1108 = vpop.f32.mrf.mxu0
    %v1109 = vadd.f32 0.0, %v1108
    %1110 = vdwg.mxu0
    %v1111 = vld [vmem:[%s4] sm:$0xff]
    %v1112 = vld [vmem:[%s4 + $0x8] sm:$0xff]
    %v1113 = vld [vmem:[%s4 + $0x10] sm:$0xff]
    %v1114 = vld [vmem:[%s4 + $0x18] sm:$0xff]
    %v1115 = vld [vmem:[%s4 + $0x20] sm:$0xff]
    %v1116 = vld [vmem:[%s4 + $0x28] sm:$0xff]
    %v1117 = vld [vmem:[%s4 + $0x30] sm:$0xff]
    %v1118 = vld [vmem:[%s4 + $0x38] sm:$0xff]
    %v1119 = vld [vmem:[%s4 + $0x40] sm:$0xff]
    %v1120 = vld [vmem:[%s4 + $0x48] sm:$0xff]
    %v1121 = vld [vmem:[%s4 + $0x50] sm:$0xff]
    %v1122 = vld [vmem:[%s4 + $0x58] sm:$0xff]
    %v1123 = vld [vmem:[%s4 + $0x60] sm:$0xff]
    %v1124 = vld [vmem:[%s4 + $0x68] sm:$0xff]
    %v1125 = vld [vmem:[%s4 + $0x70] sm:$0xff]
    %v1126 = vld [vmem:[%s4 + $0x78] sm:$0xff]
    %v1127 = vld [vmem:[%s4 + $0x80] sm:$0xff]
    %v1128 = vld [vmem:[%s4 + $0x88] sm:$0xff]
    %v1129 = vld [vmem:[%s4 + $0x90] sm:$0xff]
    %v1130 = vld [vmem:[%s4 + $0x98] sm:$0xff]
    %v1131 = vld [vmem:[%s4 + $0xa0] sm:$0xff]
    %v1132 = vld [vmem:[%s4 + $0xa8] sm:$0xff]
    %v1133 = vld [vmem:[%s4 + $0xb0] sm:$0xff]
    %v1134 = vld [vmem:[%s4 + $0xb8] sm:$0xff]
    %v1135 = vld [vmem:[%s4 + $0xc0] sm:$0xff]
    %v1136 = vld [vmem:[%s4 + $0xc8] sm:$0xff]
    %v1137 = vld [vmem:[%s4 + $0xd0] sm:$0xff]
    %v1138 = vld [vmem:[%s4 + $0xd8] sm:$0xff]
    %v1139 = vld [vmem:[%s4 + $0xe0] sm:$0xff]
    %v1140 = vld [vmem:[%s4 + $0xe8] sm:$0xff]
    %v1141 = vld [vmem:[%s4 + $0xf0] sm:$0xff]
    %v1142 = vld [vmem:[%s4 + $0xf8] sm:$0xff]
    %v1143 = vld [vmem:[%s4 + $0x100] sm:$0xff]
    %v1144 = vld [vmem:[%s4 + $0x108] sm:$0xff]
    %v1145 = vld [vmem:[%s4 + $0x110] sm:$0xff]
    %v1146 = vld [vmem:[%s4 + $0x118] sm:$0xff]
    %v1147 = vld [vmem:[%s4 + $0x120] sm:$0xff]
    %v1148 = vld [vmem:[%s4 + $0x128] sm:$0xff]
    %v1149 = vld [vmem:[%s4 + $0x130] sm:$0xff]
    %v1150 = vld [vmem:[%s4 + $0x138] sm:$0xff]
    %v1151 = vld [vmem:[%s4 + $0x140] sm:$0xff]
    %v1152 = vld [vmem:[%s4 + $0x148] sm:$0xff]
    %v1153 = vld [vmem:[%s4 + $0x150] sm:$0xff]
    %v1154 = vld [vmem:[%s4 + $0x158] sm:$0xff]
    %v1155 = vld [vmem:[%s4 + $0x160] sm:$0xff]
    %v1156 = vld [vmem:[%s4 + $0x168] sm:$0xff]
    %v1157 = vld [vmem:[%s4 + $0x170] sm:$0xff]
    %v1158 = vld [vmem:[%s4 + $0x178] sm:$0xff]
    %v1159 = vld [vmem:[%s4 + $0x180] sm:$0xff]
    %v1160 = vld [vmem:[%s4 + $0x188] sm:$0xff]
    %v1161 = vld [vmem:[%s4 + $0x190] sm:$0xff]
    %v1162 = vld [vmem:[%s4 + $0x198] sm:$0xff]
    %v1163 = vld [vmem:[%s4 + $0x1a0] sm:$0xff]
    %v1164 = vld [vmem:[%s4 + $0x1a8] sm:$0xff]
    %v1165 = vld [vmem:[%s4 + $0x1b0] sm:$0xff]
    %v1166 = vld [vmem:[%s4 + $0x1b8] sm:$0xff]
    %v1167 = vld [vmem:[%s4 + $0x1c0] sm:$0xff]
    %v1168 = vld [vmem:[%s4 + $0x1c8] sm:$0xff]
    %v1169 = vld [vmem:[%s4 + $0x1d0] sm:$0xff]
    %v1170 = vld [vmem:[%s4 + $0x1d8] sm:$0xff]
    %v1171 = vld [vmem:[%s4 + $0x1e0] sm:$0xff]
    %v1172 = vld [vmem:[%s4 + $0x1e8] sm:$0xff]
    %v1173 = vld [vmem:[%s4 + $0x1f0] sm:$0xff]
    %v1174 = vld [vmem:[%s4 + $0x1f8] sm:$0xff]
    %v1175 = vld [vmem:[%s5] sm:$0x1]
    %v1177 = vperm.slane %v1175, 0
    %1179 = vmatpush.msra.mxu0 %v1126
    %1180 = vmatpush.msra.mxu0 %v1125
    %1181 = vmatpush.msra.mxu0 %v1124
    %1182 = vmatpush.msra.mxu0 %v1123
    %1183 = vmatpush.msra.mxu0 %v1122
    %1184 = vmatpush.msra.mxu0 %v1121
    %1185 = vmatpush.msra.mxu0 %v1120
    %1186 = vmatpush.msra.mxu0 %v1119
    %1187 = vmatpush.msra.mxu0 %v1118
    %1188 = vmatpush.msra.mxu0 %v1117
    %1189 = vmatpush.msra.mxu0 %v1116
    %1190 = vmatpush.msra.mxu0 %v1115
    %1191 = vmatpush.msra.mxu0 %v1114
    %1192 = vmatpush.msra.mxu0 %v1113
    %1193 = vmatpush.msra.mxu0 %v1112
    %1194 = vmatpush.msra.mxu0 %v1111
    %1195 = vmatmul.f32.gmra.mxu0 %v1049
    %v1196 = vpop.f32.mrf.mxu0
    %v1197 = vadd.f32 %v1177, %v1196
    %1198 = vdwg.mxu0
    %1199 = vmatpush.msra.mxu0 %v1142
    %1200 = vmatpush.msra.mxu0 %v1141
    %1201 = vmatpush.msra.mxu0 %v1140
    %1202 = vmatpush.msra.mxu0 %v1139
    %1203 = vmatpush.msra.mxu0 %v1138
    %1204 = vmatpush.msra.mxu0 %v1137
    %1205 = vmatpush.msra.mxu0 %v1136
    %1206 = vmatpush.msra.mxu0 %v1135
    %1207 = vmatpush.msra.mxu0 %v1134
    %1208 = vmatpush.msra.mxu0 %v1133
    %1209 = vmatpush.msra.mxu0 %v1132
    %1210 = vmatpush.msra.mxu0 %v1131
    %1211 = vmatpush.msra.mxu0 %v1130
    %1212 = vmatpush.msra.mxu0 %v1129
    %1213 = vmatpush.msra.mxu0 %v1128
    %1214 = vmatpush.msra.mxu0 %v1127
    %1215 = vmatmul.f32.gmra.mxu0 %v1069
    %v1216 = vpop.f32.mrf.mxu0
    %v1217 = vadd.f32 %v1197, %v1216
    %1218 = vdwg.mxu0
    %1219 = vmatpush.msra.mxu0 %v1158
    %1220 = vmatpush.msra.mxu0 %v1157
    %1221 = vmatpush.msra.mxu0 %v1156
    %1222 = vmatpush.msra.mxu0 %v1155
    %1223 = vmatpush.msra.mxu0 %v1154
    %1224 = vmatpush.msra.mxu0 %v1153
    %1225 = vmatpush.msra.mxu0 %v1152
    %1226 = vmatpush.msra.mxu0 %v1151
    %1227 = vmatpush.msra.mxu0 %v1150
    %1228 = vmatpush.msra.mxu0 %v1149
    %1229 = vmatpush.msra.mxu0 %v1148
    %1230 = vmatpush.msra.mxu0 %v1147
    %1231 = vmatpush.msra.mxu0 %v1146
    %1232 = vmatpush.msra.mxu0 %v1145
    %1233 = vmatpush.msra.mxu0 %v1144
    %1234 = vmatpush.msra.mxu0 %v1143
    %1235 = vmatmul.f32.gmra.mxu0 %v1089
    %v1236 = vpop.f32.mrf.mxu0
    %v1237 = vadd.f32 %v1217, %v1236
    %1238 = vdwg.mxu0
    %1239 = vmatpush.msra.mxu0 %v1174
    %1240 = vmatpush.msra.mxu0 %v1173
    %1241 = vmatpush.msra.mxu0 %v1172
    %1242 = vmatpush.msra.mxu0 %v1171
    %1243 = vmatpush.msra.mxu0 %v1170
    %1244 = vmatpush.msra.mxu0 %v1169
    %1245 = vmatpush.msra.mxu0 %v1168
    %1246 = vmatpush.msra.mxu0 %v1167
    %1247 = vmatpush.msra.mxu0 %v1166
    %1248 = vmatpush.msra.mxu0 %v1165
    %1249 = vmatpush.msra.mxu0 %v1164
    %1250 = vmatpush.msra.mxu0 %v1163
    %1251 = vmatpush.msra.mxu0 %v1162
    %1252 = vmatpush.msra.mxu0 %v1161
    %1253 = vmatpush.msra.mxu0 %v1160
    %1254 = vmatpush.msra.mxu0 %v1159
    %1255 = vmatmul.f32.gmra.mxu0 %v1109
    %v1256 = vpop.f32.mrf.mxu0
    %v1257 = vadd.f32 %v1237, %v1256
    %1258 = vdwg.mxu0
    %vm1259 = vcmask 58368
    %1260 = vst.msk [vmem:[#allocation2] sm:$0x3] %vm1259, %v1257
    // Predicated region
    $region26: #{full_model_forward.1} parent=1 // pred_check
      _
    $region27: #{full_model_forward.1} parent=1 // pred_check_branch
      %1262 = sbr.rel (0) target = $region29
    $region28: #{full_model_forward.1} parent=1 // pred_region
      %1264 = vsyncadd [#allocation3], 0
      %s1266 = sshll.u32 [#allocation2], 4
      %s1267 = int_to_ptr.vmem [resolvable:$true] %s1266
      %s1268 = sshll.u32 %s6, 4
      %s1269 = int_to_ptr.hbm [resolvable:$true] %s1268
      %1271 = dma.vmem_to_hbm [thread:$0]  %s1267, 32, %s1269, [#allocation3]
    $region29: #{full_model_forward.1} parent=1 // pred_fallthru
      _
    // Predicated region
    $region30: #{full_model_forward.1} parent=1 // pred_check
      _
    $region31: #{full_model_forward.1} parent=1 // pred_check_branch
      %1273 = sbr.rel (0) target = $region33
    $region32: #{full_model_forward.1} parent=1 // pred_region
      %1275 = dma.done [#allocation3], 32
    $region33: #{full_model_forward.1} parent=1 // pred_fallthru
      _
    %1276 = vsyncpa [#allocation3], 1

</llo_original>
